<compile_context>
chip_gen: v7x
topology: tpu7x:2x2x1
jax: 0.10.0
libtpu: 0.0.40
codegen_flags: <defaults>
</compile_context>

<pallas_src>
import functools
import math

import jax
import jax.numpy as jnp
from jax import lax
from jax.experimental import pallas as pl
from jax.experimental.pallas import tpu as pltpu


def _rope_gate_kernel(x_ref, cos_ref, sin_ref, fe_ref, w1_ref, b1_ref,
                      w2_ref, b2_ref, o_ref, *, num_heads, head_dim):
    """One row tile [TM, D]: RoPE + precomputed sinusoid + gate-MLP combine."""
    x = x_ref[...]                                   # [TM, D] f32
    dh2 = head_dim // 2

    # --- per-head half swap, done in-kernel (no x_sw HBM traffic) ---
    pieces = []
    for h in range(num_heads):                       # static, small
        lo = h * head_dim
        pieces.append(x[:, lo + dh2: lo + head_dim])
        pieces.append(x[:, lo: lo + dh2])
    x_sw = jnp.concatenate(pieces, axis=-1)          # [TM, D]

    # --- rotary embedding (per-feature cos / +-sin precomputed in wrapper) ---
    rope = x * cos_ref[...] + x_sw * sin_ref[...]    # [TM, D]

    # --- learnable sinusoidal encoding (precomputed, grid-invariant) ---
    freq_out = x * fe_ref[...]                       # [TM, D]

    # --- gate MLP: Linear(D,4D) -> SiLU -> Linear(4D,D) -> Sigmoid ---
    # Weights are in torch [out, in] layout; contract the last dims (NT matmul)
    # so no wrapper-side transpose is needed.  bf16 operands, f32 accumulation.
    nt = (((1,), (1,)), ((), ()))
    h1 = lax.dot_general(x.astype(jnp.bfloat16), w1_ref[...], nt,
                         preferred_element_type=jnp.float32) + b1_ref[...]
    h1 = h1 * jax.nn.sigmoid(h1)                     # SiLU in f32
    g = jax.nn.sigmoid(
        lax.dot_general(h1.astype(jnp.bfloat16), w2_ref[...], nt,
                        preferred_element_type=jnp.float32) + b2_ref[...])

    o_ref[...] = (g * rope + (1.0 - g) * freq_out).astype(o_ref.dtype)


def rope_forward(x, params, *, target_rows=256):
    """Pallas forward.  x: [B, T, D] float32."""
    B, T, D = x.shape
    H = int(params["num_heads"])
    assert D % (2 * H) == 0
    Dh = D // H
    Dh2 = Dh // 2
    assert T == Dh2, "reference broadcast in _apply_rope requires T == D/(2*H)"
    N = B * T

    # --- grid-invariant precompute (once per call, outside the kernel) ---
    # RoPE coefficients, matching the torch broadcast: freq[h,k] = exp(rope_freq[h,k]*k)
    k = jnp.arange(Dh2, dtype=jnp.float32)
    freq = jnp.exp(params["rope_freq"] * k[None, :])              # [H, Dh2]
    cos_h, sin_h = jnp.cos(freq), jnp.sin(freq)
    cos_d = jnp.concatenate([cos_h, cos_h], axis=-1).reshape(1, D)
    sin_d = jnp.concatenate([-sin_h, sin_h], axis=-1).reshape(1, D)

    # Learnable sinusoid sin(pos * fw + phase): computed once, not per grid step.
    pos = jnp.arange(T, dtype=jnp.float32)
    fe_T = jnp.sin(pos[:, None] * params["freq_weights"][None, :]
                   + params["phase_shift"][None, :])              # [T, D]

    # --- row tiling over flattened B*T ---
    # TM = T * seqs with seqs | B, so the per-sequence encoding tile stays
    # aligned; TM must also be a multiple of 8 (sublane) unless it spans N.
    seqs = max(1, min(B, max(1, target_rows // T)))
    while B % seqs:
        seqs -= 1
    TM = T * seqs
    if TM != N and TM % 8 != 0:
        seqs, TM = B, N
    fe_tile = jnp.tile(fe_T, (seqs, 1))                           # [TM, D] const

    x2d = x.reshape(N, D)
    # Keep torch [out, in] layout (no transpose pass); bf16 for the MXU.
    w1 = params["w1"].astype(jnp.bfloat16)                        # [4D, D]
    w2 = params["w2"].astype(jnp.bfloat16)                        # [D, 4D]
    b1 = params["b1"].reshape(1, 4 * D).astype(jnp.float32)
    b2 = params["b2"].reshape(1, D).astype(jnp.float32)

    grid = (N // TM,)
    row_spec = pl.BlockSpec((TM, D), lambda i: (i, 0))

    def const(shape):
        return pl.BlockSpec(shape, lambda i: (0, 0))

    flops = 2 * N * D * (4 * D) * 2                               # two matmuls
    transcendentals = N * (4 * D) + 2 * N * D                     # SiLU + sigmoid
    bytes_accessed = (2 * N * D * 4                               # x in + out
                      + 2 * 4 * D * D * 2                         # bf16 weights
                      + TM * D * 4 + 2 * D * 4 + 4 * D * 4 + D * 4)

    kernel = functools.partial(_rope_gate_kernel, num_heads=H, head_dim=Dh)
    out2d = pl.pallas_call(
        kernel,
        out_shape=jax.ShapeDtypeStruct((N, D), x.dtype),
        grid=grid,
        in_specs=[row_spec,
                  const((1, D)), const((1, D)), const((TM, D)),
                  const((4 * D, D)), const((1, 4 * D)),
                  const((D, 4 * D)), const((1, D))],
        out_specs=row_spec,
        compiler_params=pltpu.CompilerParams(
            dimension_semantics=("parallel",),
            vmem_limit_bytes=64 * 1024 * 1024),
        cost_estimate=pl.CostEstimate(flops=flops,
                                      transcendentals=transcendentals,
                                      bytes_accessed=bytes_accessed),
    )(x2d, cos_d, sin_d, fe_tile, w1, b1, w2, b2)
    return out2d.reshape(B, T, D)


def rope_reference(x, params):
    """Pure-JAX mirror of the PyTorch forward (for correctness check)."""
    B, T, D = x.shape
    H = int(params["num_heads"])
    Dh = D // H
    Dh2 = Dh // 2
    k = jnp.arange(Dh2, dtype=jnp.float32)
    freq = jnp.exp(params["rope_freq"] * k[None, :])              # [H, Dh2]
    cos, sin = jnp.cos(freq), jnp.sin(freq)
    xr = x.reshape(B, T, H, Dh).transpose(0, 2, 1, 3)
    x1, x2 = xr[..., :Dh2], xr[..., Dh2:]
    cb = cos[None, :, None, :]
    sb = sin[None, :, None, :]
    rot = jnp.concatenate([x1 * cb - x2 * sb, x2 * cb + x1 * sb], axis=-1)
    rope_out = rot.transpose(0, 2, 1, 3).reshape(B, T, D)

    pos = jnp.arange(T, dtype=jnp.float32)
    freq_enc = jnp.sin(pos[:, None] * params["freq_weights"] + params["phase_shift"])
    freq_out = x * freq_enc[None]

    h = x @ params["w1"].T + params["b1"]
    h = h * jax.nn.sigmoid(h)
    g = jax.nn.sigmoid(h @ params["w2"].T + params["b2"])
    return g * rope_out + (1.0 - g) * freq_out


if __name__ == "__main__":
    B, T, H = 2, 8, 2
    D = 2 * H * T          # 32; enforces T == D/(2H) required by the reference broadcast
    max_len = 16
    Dh2 = D // H // 2

    key = jax.random.PRNGKey(0)
    ks = jax.random.split(key, 9)
    params = {
        "num_heads": H,
        # nn.init.normal_(mean=log(max_len)/2, std=0.02)
        "rope_freq": (math.log(max_len) / 2
                      + 0.02 * jax.random.normal(ks[0], (H, Dh2), jnp.float32)),
        "freq_weights": jax.random.normal(ks[1], (D,), jnp.float32),
        "phase_shift": jax.random.normal(ks[2], (D,), jnp.float32),
        # rel_pos_bias embedding exists in the module but only feeds the skipped
        # attn_weights side effect; initialized here for shape parity.
        "rel_pos_bias": jax.random.normal(ks[3], (2 * max_len + 1, H), jnp.float32),
        "w1": 0.05 * jax.random.normal(ks[4], (4 * D, D), jnp.float32),
        "b1": 0.05 * jax.random.normal(ks[5], (4 * D,), jnp.float32),
        "w2": 0.05 * jax.random.normal(ks[6], (D, 4 * D), jnp.float32),
        "b2": 0.05 * jax.random.normal(ks[7], (D,), jnp.float32),
    }
    x = jax.random.normal(ks[8], (B, T, D), jnp.float32)

    out = jax.block_until_ready(rope_forward(x, params))
    ref = rope_reference(x, params)
    assert out.shape == (B, T, D)
    err = float(jnp.max(jnp.abs(out - ref)))
    assert jnp.allclose(out, ref, atol=2e-2, rtol=2e-2), f"max abs err {err}"
    print("KERNEL_OK")
</pallas_src>

<mosaic_0001>
module attributes {stable_mosaic.version = 11 : i64} {
  func.func @_rope_gate_kernel(%arg0: i32, %arg1: memref<16x32xf32, #tpu.memory_space<vmem>>, %arg2: memref<1x32xf32, #tpu.memory_space<vmem>>, %arg3: memref<1x32xf32, #tpu.memory_space<vmem>>, %arg4: memref<16x32xf32, #tpu.memory_space<vmem>>, %arg5: memref<128x32xbf16, #tpu.memory_space<vmem>>, %arg6: memref<1x128xf32, #tpu.memory_space<vmem>>, %arg7: memref<32x128xbf16, #tpu.memory_space<vmem>>, %arg8: memref<1x32xf32, #tpu.memory_space<vmem>>, %arg9: memref<16x32xf32, #tpu.memory_space<vmem>>) attributes {dimension_semantics = [#tpu.dimension_semantics<parallel>], iteration_bounds = array<i64: 1>, scalar_prefetch = 0 : i64, scratch_operands = 0 : i64, tpu.core_type = #tpu.core_type<tc>, window_params = [{transform_indices = @transform_0, window_bounds = array<i64: 16, 32>}, {pipeline_mode = #tpu.pipeline_mode<synchronous>, transform_indices = @transform_1, window_bounds = array<i64: 1, 32>}, {pipeline_mode = #tpu.pipeline_mode<synchronous>, transform_indices = @transform_2, window_bounds = array<i64: 1, 32>}, {pipeline_mode = #tpu.pipeline_mode<synchronous>, transform_indices = @transform_3, window_bounds = array<i64: 16, 32>}, {pipeline_mode = #tpu.pipeline_mode<synchronous>, transform_indices = @transform_4, window_bounds = array<i64: 128, 32>}, {pipeline_mode = #tpu.pipeline_mode<synchronous>, transform_indices = @transform_5, window_bounds = array<i64: 1, 128>}, {pipeline_mode = #tpu.pipeline_mode<synchronous>, transform_indices = @transform_6, window_bounds = array<i64: 32, 128>}, {pipeline_mode = #tpu.pipeline_mode<synchronous>, transform_indices = @transform_7, window_bounds = array<i64: 1, 32>}, {transform_indices = @transform_8, window_bounds = array<i64: 16, 32>}]} {
    %c0 = arith.constant 0 : index
    %c0_0 = arith.constant 0 : index
    %0 = vector.load %arg1[%c0, %c0_0] : memref<16x32xf32, #tpu.memory_space<vmem>>, vector<16x32xf32>
    %1 = vector.extract_strided_slice %0 {offsets = [0, 8], sizes = [16, 8], strides = [1, 1]} : vector<16x32xf32> to vector<16x8xf32>
    %2 = vector.extract_strided_slice %0 {offsets = [0, 0], sizes = [16, 8], strides = [1, 1]} : vector<16x32xf32> to vector<16x8xf32>
    %3 = vector.extract_strided_slice %0 {offsets = [0, 24], sizes = [16, 8], strides = [1, 1]} : vector<16x32xf32> to vector<16x8xf32>
    %4 = vector.extract_strided_slice %0 {offsets = [0, 16], sizes = [16, 8], strides = [1, 1]} : vector<16x32xf32> to vector<16x8xf32>
    %5 = tpu.concatenate %1, %2, %3, %4 in 1 : vector<16x8xf32>, vector<16x8xf32>, vector<16x8xf32>, vector<16x8xf32> -> vector<16x32xf32>
    %c0_1 = arith.constant 0 : index
    %c0_2 = arith.constant 0 : index
    %6 = vector.load %arg2[%c0_1, %c0_2] : memref<1x32xf32, #tpu.memory_space<vmem>>, vector<1x32xf32>
    %7 = vector.broadcast %6 : vector<1x32xf32> to vector<16x32xf32>
    %8 = arith.mulf %0, %7 : vector<16x32xf32>
    %c0_3 = arith.constant 0 : index
    %c0_4 = arith.constant 0 : index
    %9 = vector.load %arg3[%c0_3, %c0_4] : memref<1x32xf32, #tpu.memory_space<vmem>>, vector<1x32xf32>
    %10 = vector.broadcast %9 : vector<1x32xf32> to vector<16x32xf32>
    %11 = arith.mulf %5, %10 : vector<16x32xf32>
    %12 = arith.addf %8, %11 : vector<16x32xf32>
    %c0_5 = arith.constant 0 : index
    %c0_6 = arith.constant 0 : index
    %13 = vector.load %arg4[%c0_5, %c0_6] : memref<16x32xf32, #tpu.memory_space<vmem>>, vector<16x32xf32>
    %14 = arith.mulf %0, %13 : vector<16x32xf32>
    %15 = arith.truncf %0 : vector<16x32xf32> to vector<16x32xbf16>
    %c0_7 = arith.constant 0 : index
    %c0_8 = arith.constant 0 : index
    %16 = vector.load %arg5[%c0_7, %c0_8] : memref<128x32xbf16, #tpu.memory_space<vmem>>, vector<128x32xbf16>
    %cst = arith.constant dense<0.000000e+00> : vector<16x128xf32>
    %17 = tpu.matmul %15, %16, %cst {dimension_numbers = #tpu.dot_dimension_numbers<[1], [1], [0], [0], [0, 0, 1, 0], [], []>} : vector<16x32xbf16>, vector<128x32xbf16>, vector<16x128xf32> -> vector<16x128xf32>
    %c0_9 = arith.constant 0 : index
    %c0_10 = arith.constant 0 : index
    %18 = vector.load %arg6[%c0_9, %c0_10] : memref<1x128xf32, #tpu.memory_space<vmem>>, vector<1x128xf32>
    %19 = vector.broadcast %18 : vector<1x128xf32> to vector<16x128xf32>
    %20 = arith.addf %17, %19 : vector<16x128xf32>
    %21 = arith.negf %20 : vector<16x128xf32>
    %22 = math.exp %21 : vector<16x128xf32>
    %cst_11 = arith.constant 1.000000e+00 : f32
    %23 = vector.broadcast %cst_11 : f32 to vector<16x128xf32>
    %24 = arith.addf %23, %22 : vector<16x128xf32>
    %25 = arith.divf %23, %24 : vector<16x128xf32>
    %26 = arith.mulf %20, %25 : vector<16x128xf32>
    %27 = arith.truncf %26 : vector<16x128xf32> to vector<16x128xbf16>
    %c0_12 = arith.constant 0 : index
    %c0_13 = arith.constant 0 : index
    %28 = vector.load %arg7[%c0_12, %c0_13] : memref<32x128xbf16, #tpu.memory_space<vmem>>, vector<32x128xbf16>
    %cst_14 = arith.constant dense<0.000000e+00> : vector<16x32xf32>
    %29 = tpu.matmul %27, %28, %cst_14 {dimension_numbers = #tpu.dot_dimension_numbers<[1], [1], [0], [0], [0, 0, 1, 0], [], []>} : vector<16x128xbf16>, vector<32x128xbf16>, vector<16x32xf32> -> vector<16x32xf32>
    %c0_15 = arith.constant 0 : index
    %c0_16 = arith.constant 0 : index
    %30 = vector.load %arg8[%c0_15, %c0_16] : memref<1x32xf32, #tpu.memory_space<vmem>>, vector<1x32xf32>
    %31 = vector.broadcast %30 : vector<1x32xf32> to vector<16x32xf32>
    %32 = arith.addf %29, %31 : vector<16x32xf32>
    %33 = arith.negf %32 : vector<16x32xf32>
    %34 = math.exp %33 : vector<16x32xf32>
    %cst_17 = arith.constant 1.000000e+00 : f32
    %35 = vector.broadcast %cst_17 : f32 to vector<16x32xf32>
    %36 = arith.addf %35, %34 : vector<16x32xf32>
    %37 = arith.divf %35, %36 : vector<16x32xf32>
    %38 = arith.mulf %37, %12 : vector<16x32xf32>
    %cst_18 = arith.constant 1.000000e+00 : f32
    %39 = vector.broadcast %cst_18 : f32 to vector<16x32xf32>
    %40 = arith.subf %39, %37 : vector<16x32xf32>
    %41 = arith.mulf %40, %14 : vector<16x32xf32>
    %42 = arith.addf %38, %41 : vector<16x32xf32>
    %c0_19 = arith.constant 0 : index
    %c0_20 = arith.constant 0 : index
    %43 = vector.load %arg9[%c0_19, %c0_20] : memref<16x32xf32, #tpu.memory_space<vmem>>, vector<16x32xf32>
    tpu.vector_store %arg9[%c0_19, %c0_20], %42 {strides = array<i32>} : memref<16x32xf32, #tpu.memory_space<vmem>>, vector<16x32xf32>,
    return
  }
  func.func @transform_0(%arg0: i32) -> (i32, i32) {
    %c0_i32 = arith.constant 0 : i32
    %c0_i32_0 = arith.constant 0 : i32
    return %arg0, %c0_i32 : i32, i32
  }
  func.func @transform_1(%arg0: i32) -> (i32, i32) {
    %c0_i32 = arith.constant 0 : i32
    %c0_i32_0 = arith.constant 0 : i32
    %c0_i32_1 = arith.constant 0 : i32
    return %c0_i32, %c0_i32_0 : i32, i32
  }
  func.func @transform_2(%arg0: i32) -> (i32, i32) {
    %c0_i32 = arith.constant 0 : i32
    %c0_i32_0 = arith.constant 0 : i32
    %c0_i32_1 = arith.constant 0 : i32
    return %c0_i32, %c0_i32_0 : i32, i32
  }
  func.func @transform_3(%arg0: i32) -> (i32, i32) {
    %c0_i32 = arith.constant 0 : i32
    %c0_i32_0 = arith.constant 0 : i32
    %c0_i32_1 = arith.constant 0 : i32
    return %c0_i32, %c0_i32_0 : i32, i32
  }
  func.func @transform_4(%arg0: i32) -> (i32, i32) {
    %c0_i32 = arith.constant 0 : i32
    %c0_i32_0 = arith.constant 0 : i32
    %c0_i32_1 = arith.constant 0 : i32
    return %c0_i32, %c0_i32_0 : i32, i32
  }
  func.func @transform_5(%arg0: i32) -> (i32, i32) {
    %c0_i32 = arith.constant 0 : i32
    %c0_i32_0 = arith.constant 0 : i32
    %c0_i32_1 = arith.constant 0 : i32
    return %c0_i32, %c0_i32_0 : i32, i32
  }
  func.func @transform_6(%arg0: i32) -> (i32, i32) {
    %c0_i32 = arith.constant 0 : i32
    %c0_i32_0 = arith.constant 0 : i32
    %c0_i32_1 = arith.constant 0 : i32
    return %c0_i32, %c0_i32_0 : i32, i32
  }
  func.func @transform_7(%arg0: i32) -> (i32, i32) {
    %c0_i32 = arith.constant 0 : i32
    %c0_i32_0 = arith.constant 0 : i32
    %c0_i32_1 = arith.constant 0 : i32
    return %c0_i32, %c0_i32_0 : i32, i32
  }
  func.func @transform_8(%arg0: i32) -> (i32, i32) {
    %c0_i32 = arith.constant 0 : i32
    %c0_i32_0 = arith.constant 0 : i32
    return %arg0, %c0_i32 : i32, i32
  }
}

</mosaic_0001>

<llo_original>
// kernel: tpu_custom_call.1
$region0: #{tpu_custom_call.1}
  #allocation0 [shape = 'u32[]', space=smem, size = 0x4, offset = 0x4, fixed_abs, tag = 'smem constant byte address 0x4 - core index']
  #allocation1 [shape = 'u32[144,128]{1,0:T(1,128)}', space=vmem, size = 0x12000, scoped, tag = 'internal scratch']
  %s0 = inlined_call_operand.hbm [shape: f32[16,32], index: 0, kind: input, shape index: {}]
  %s1 = inlined_call_operand.hbm [shape: f32[1,32], index: 1, kind: input, shape index: {}]
  %s2 = inlined_call_operand.hbm [shape: f32[1,32], index: 2, kind: input, shape index: {}]
  %s3 = inlined_call_operand.hbm [shape: f32[16,32], index: 3, kind: input, shape index: {}]
  %s4 = inlined_call_operand.hbm [shape: bf16[128,32], index: 4, kind: input, shape index: {}]
  %s5 = inlined_call_operand.hbm [shape: f32[1,128], index: 5, kind: input, shape index: {}]
  %s6 = inlined_call_operand.hbm [shape: bf16[32,128], index: 6, kind: input, shape index: {}]
  %s7 = inlined_call_operand.hbm [shape: f32[1,32], index: 7, kind: input, shape index: {}]
  %s8 = inlined_call_operand.hbm [shape: f32[16,32], index: 8, kind: output, shape index: {}]
  %s9 = sld [smem:[#allocation0]]
  $region74: #{tpu_custom_call.1} parent=0
    _
  %s11 = ssub.s32 1, %s9
  %s12 = scalar_select 0, %s11, %s9
  $region1: #{tpu_custom_call.1} parent=0
    #allocation2 [shape = 'u8[8192]{0}', space=vmem, size = 0x2000, scoped, tag = 'input window, operand 0, single buffered']
    #allocation3 [shape = 's32[1]{0}', space=sflag, size = 0x4, scoped, tag = 'scoped memory for tpu_custom_call.1']
    #allocation4 [shape = 's32[1]{0}', space=sflag, size = 0x4, scoped, tag = 'scoped memory for tpu_custom_call.1']
    #allocation5 [shape = 'u8[512]{0}', space=vmem, size = 0x400, scoped, tag = 'input window, operand 1, single buffered']
    #allocation6 [shape = 's32[1]{0}', space=sflag, size = 0x4, scoped, tag = 'scoped memory for tpu_custom_call.1']
    #allocation7 [shape = 'u8[512]{0}', space=vmem, size = 0x400, scoped, tag = 'input window, operand 2, single buffered']
    #allocation8 [shape = 'u8[8192]{0}', space=vmem, size = 0x2000, scoped, tag = 'input window, operand 3, single buffered']
    #allocation9 [shape = 's32[1]{0}', space=sflag, size = 0x4, scoped, tag = 'scoped memory for tpu_custom_call.1']
    #allocation10 [shape = 'u8[32768]{0}', space=vmem, size = 0x8000, scoped, tag = 'input window, operand 4, single buffered']
    #allocation11 [shape = 'u8[512]{0}', space=vmem, size = 0x400, scoped, tag = 'input window, operand 5, single buffered']
    #allocation12 [shape = 's32[1]{0}', space=sflag, size = 0x4, scoped, tag = 'scoped memory for tpu_custom_call.1']
    #allocation13 [shape = 'u8[8192]{0}', space=vmem, size = 0x2000, scoped, tag = 'input window, operand 6, single buffered']
    #allocation14 [shape = 'u8[512]{0}', space=vmem, size = 0x400, scoped, tag = 'input window, operand 7, single buffered']
    #allocation15 [shape = 's32[1]{0}', space=sflag, size = 0x4, scoped, tag = 'scoped memory for tpu_custom_call.1']
    #allocation16 [shape = 'u8[8192]{0}', space=vmem, size = 0x2000, scoped, tag = 'output window, operand 0, single buffered']
    %13 = vsyncpa [#allocation3], 0
    %14 = vsyncpa [#allocation6], 0
    %15 = vsyncpa [#allocation9], 0
    %16 = vsyncpa [#allocation12], 0
    %17 = vsyncpa [#allocation15], 0
    %18 = vsyncpa [#allocation4], 0
    // Predicated region
    $region2: #{tpu_custom_call.1} parent=1 // pred_check
      _
    $region3: #{tpu_custom_call.1} parent=1 // pred_check_branch
      %20 = sbr.rel (0) target = $region5
    $region4: #{tpu_custom_call.1} parent=1 // pred_region
      %s22 = ssub.s32 256, 256
      %23 = vsyncadd [#allocation3], %s22
      %s24 = sshll.u32 [#allocation2], 4
      %s25 = int_to_ptr.vmem [resolvable:$true] %s24
      %30 = dma.hbm_to_vmem [thread:$0]  %s0, 256, %s25, [#allocation3], 128, 128, 8
    $region5: #{tpu_custom_call.1} parent=1 // pred_fallthru
      _
    // Predicated region
    $region6: #{tpu_custom_call.1} parent=1 // pred_check
      _
    $region7: #{tpu_custom_call.1} parent=1 // pred_check_branch
      %32 = sbr.rel (0) target = $region9
    $region8: #{tpu_custom_call.1} parent=1 // pred_region
      %s34 = ssub.s32 16, 16
      %35 = vsyncadd [#allocation6], %s34
      %s37 = sshll.u32 [#allocation5], 4
      %s38 = int_to_ptr.vmem [resolvable:$true] %s37
      %40 = dma.hbm_to_vmem [thread:$0]  %s1, 16, %s38, [#allocation6]
    $region9: #{tpu_custom_call.1} parent=1 // pred_fallthru
      _
    // Predicated region
    $region10: #{tpu_custom_call.1} parent=1 // pred_check
      _
    $region11: #{tpu_custom_call.1} parent=1 // pred_check_branch
      %42 = sbr.rel (0) target = $region13
    $region12: #{tpu_custom_call.1} parent=1 // pred_region
      %s44 = ssub.s32 16, 16
      %45 = vsyncadd [#allocation6], %s44
      %s47 = sshll.u32 [#allocation7], 4
      %s48 = int_to_ptr.vmem [resolvable:$true] %s47
      %50 = dma.hbm_to_vmem [thread:$0]  %s2, 16, %s48, [#allocation6]
    $region13: #{tpu_custom_call.1} parent=1 // pred_fallthru
      _
    // Predicated region
    $region14: #{tpu_custom_call.1} parent=1 // pred_check
      _
    $region15: #{tpu_custom_call.1} parent=1 // pred_check_branch
      %52 = sbr.rel (0) target = $region17
    $region16: #{tpu_custom_call.1} parent=1 // pred_region
      %s54 = ssub.s32 256, 256
      %55 = vsyncadd [#allocation9], %s54
      %s56 = sshll.u32 [#allocation8], 4
      %s57 = int_to_ptr.vmem [resolvable:$true] %s56
      %62 = dma.hbm_to_vmem [thread:$0]  %s3, 256, %s57, [#allocation9], 128, 128, 8
    $region17: #{tpu_custom_call.1} parent=1 // pred_fallthru
      _
    // Predicated region
    $region18: #{tpu_custom_call.1} parent=1 // pred_check
      _
    $region19: #{tpu_custom_call.1} parent=1 // pred_check_branch
      %64 = sbr.rel (0) target = $region21
    $region20: #{tpu_custom_call.1} parent=1 // pred_region
      %s66 = ssub.s32 1024, 1024
      %67 = vsyncadd [#allocation9], %s66
      %s68 = sshll.u32 [#allocation10], 4
      %s69 = int_to_ptr.vmem [resolvable:$true] %s68
      %74 = dma.hbm_to_vmem [thread:$0]  %s4, 1024, %s69, [#allocation9], 64, 64, 4
    $region21: #{tpu_custom_call.1} parent=1 // pred_fallthru
      _
    // Predicated region
    $region22: #{tpu_custom_call.1} parent=1 // pred_check
      _
    $region23: #{tpu_custom_call.1} parent=1 // pred_check_branch
      %76 = sbr.rel (0) target = $region25
    $region24: #{tpu_custom_call.1} parent=1 // pred_region
      %s78 = ssub.s32 16, 16
      %79 = vsyncadd [#allocation12], %s78
      %s81 = sshll.u32 [#allocation11], 4
      %s82 = int_to_ptr.vmem [resolvable:$true] %s81
      %84 = dma.hbm_to_vmem [thread:$0]  %s5, 16, %s82, [#allocation12]
    $region25: #{tpu_custom_call.1} parent=1 // pred_fallthru
      _
    // Predicated region
    $region26: #{tpu_custom_call.1} parent=1 // pred_check
      _
    $region27: #{tpu_custom_call.1} parent=1 // pred_check_branch
      %86 = sbr.rel (0) target = $region29
    $region28: #{tpu_custom_call.1} parent=1 // pred_region
      %s88 = ssub.s32 256, 256
      %89 = vsyncadd [#allocation12], %s88
      %s90 = sshll.u32 [#allocation13], 4
      %s91 = int_to_ptr.vmem [resolvable:$true] %s90
      %96 = dma.hbm_to_vmem [thread:$0]  %s6, 256, %s91, [#allocation12], 64, 64, 4
    $region29: #{tpu_custom_call.1} parent=1 // pred_fallthru
      _
    // Predicated region
    $region30: #{tpu_custom_call.1} parent=1 // pred_check
      _
    $region31: #{tpu_custom_call.1} parent=1 // pred_check_branch
      %98 = sbr.rel (0) target = $region33
    $region32: #{tpu_custom_call.1} parent=1 // pred_region
      %s100 = ssub.s32 16, 16
      %101 = vsyncadd [#allocation15], %s100
      %s103 = sshll.u32 [#allocation14], 4
      %s104 = int_to_ptr.vmem [resolvable:$true] %s103
      %106 = dma.hbm_to_vmem [thread:$0]  %s7, 16, %s104, [#allocation15]
    $region33: #{tpu_custom_call.1} parent=1 // pred_fallthru
      _
    // Predicated region
    $region34: #{tpu_custom_call.1} parent=1 // pred_check
      _
    $region35: #{tpu_custom_call.1} parent=1 // pred_check_branch
      %108 = sbr.rel (0) target = $region37
    $region36: #{tpu_custom_call.1} parent=1 // pred_region
      %109 = dma.done [#allocation3], 256
    $region37: #{tpu_custom_call.1} parent=1 // pred_fallthru
      _
    // Predicated region
    $region38: #{tpu_custom_call.1} parent=1 // pred_check
      _
    $region39: #{tpu_custom_call.1} parent=1 // pred_check_branch
      %111 = sbr.rel (0) target = $region41
    $region40: #{tpu_custom_call.1} parent=1 // pred_region
      %112 = dma.done [#allocation6], 16
    $region41: #{tpu_custom_call.1} parent=1 // pred_fallthru
      _
    // Predicated region
    $region42: #{tpu_custom_call.1} parent=1 // pred_check
      _
    $region43: #{tpu_custom_call.1} parent=1 // pred_check_branch
      %114 = sbr.rel (0) target = $region45
    $region44: #{tpu_custom_call.1} parent=1 // pred_region
      %115 = dma.done [#allocation6], 16
    $region45: #{tpu_custom_call.1} parent=1 // pred_fallthru
      _
    // Predicated region
    $region46: #{tpu_custom_call.1} parent=1 // pred_check
      _
    $region47: #{tpu_custom_call.1} parent=1 // pred_check_branch
      %117 = sbr.rel (0) target = $region49
    $region48: #{tpu_custom_call.1} parent=1 // pred_region
      %118 = dma.done [#allocation9], 256
    $region49: #{tpu_custom_call.1} parent=1 // pred_fallthru
      _
    // Predicated region
    $region50: #{tpu_custom_call.1} parent=1 // pred_check
      _
    $region51: #{tpu_custom_call.1} parent=1 // pred_check_branch
      %120 = sbr.rel (0) target = $region53
    $region52: #{tpu_custom_call.1} parent=1 // pred_region
      %121 = dma.done [#allocation9], 1024
    $region53: #{tpu_custom_call.1} parent=1 // pred_fallthru
      _
    // Predicated region
    $region54: #{tpu_custom_call.1} parent=1 // pred_check
      _
    $region55: #{tpu_custom_call.1} parent=1 // pred_check_branch
      %123 = sbr.rel (0) target = $region57
    $region56: #{tpu_custom_call.1} parent=1 // pred_region
      %124 = dma.done [#allocation12], 16
    $region57: #{tpu_custom_call.1} parent=1 // pred_fallthru
      _
    // Predicated region
    $region58: #{tpu_custom_call.1} parent=1 // pred_check
      _
    $region59: #{tpu_custom_call.1} parent=1 // pred_check_branch
      %126 = sbr.rel (0) target = $region61
    $region60: #{tpu_custom_call.1} parent=1 // pred_region
      %127 = dma.done [#allocation12], 256
    $region61: #{tpu_custom_call.1} parent=1 // pred_fallthru
      _
    // Predicated region
    $region62: #{tpu_custom_call.1} parent=1 // pred_check
      _
    $region63: #{tpu_custom_call.1} parent=1 // pred_check_branch
      %129 = sbr.rel (0) target = $region65
    $region64: #{tpu_custom_call.1} parent=1 // pred_region
      %130 = dma.done [#allocation15], 16
    $region65: #{tpu_custom_call.1} parent=1 // pred_fallthru
      _
    %v132 = vld [vmem:[#allocation2] sm:$0xff]
    %v133 = vld [vmem:[#allocation2 + $0x8] sm:$0xff]
    %136 = vrot.lane.b32.xlu0 %v132, 120
    %v137 = vpop.permute.xlu0 %136
    %138 = vrot.lane.b32.xlu0 %v133, 120
    %v139 = vpop.permute.xlu0 %138
    %142 = vrot.lane.b32.xlu0 %v132, 8
    %v143 = vpop.permute.xlu0 %142
    %144 = vrot.lane.b32.xlu0 %v133, 8
    %v145 = vpop.permute.xlu0 %144
    %vm148 = vcmask 64512
    %v149 = vsel %vm148, %v137, %v143
    %v150 = vsel %vm148, %v139, %v145
    %vm151 = vcmask 130048
    %v152 = vsel %vm151, %v149, %v137
    %v153 = vsel %vm151, %v150, %v139
    %vm154 = vcmask 195584
    %v155 = vsel %vm154, %v152, %v143
    %v156 = vsel %vm154, %v153, %v145
    %v157 = vld [vmem:[#allocation5] sm:$0x1]
    %v159 = vlaneseq
    %v160 = vshrl.u32 %v159, 7
    %v161 = vsub.s32 0, %v160
    %v162 = vrot.slane %v157, %v161
    %v164 = vmul.f32 %v132, %v162
    %v165 = vmul.f32 %v133, %v162
    %v166 = vld [vmem:[#allocation7] sm:$0x1]
    %v168 = vlaneseq
    %v169 = vshrl.u32 %v168, 7
    %v170 = vsub.s32 0, %v169
    %v171 = vrot.slane %v166, %v170
    %v173 = vmul.f32 %v155, %v171
    %v174 = vmul.f32 %v156, %v171
    %v175 = vadd.f32 %v164, %v173
    %v176 = vadd.f32 %v165, %v174
    %v177 = vld [vmem:[#allocation8] sm:$0xff]
    %v178 = vld [vmem:[#allocation8 + $0x8] sm:$0xff]
    %v179 = vmul.f32 %v132, %v177
    %v180 = vmul.f32 %v133, %v178
    %v181 = vpack.c.bf16 %v133, %v132
    %v182 = vld [vmem:[#allocation10] sm:$0xf]
    %v183 = vld [vmem:[#allocation10 + $0x4] sm:$0xf]
    %v184 = vld [vmem:[#allocation10 + $0x8] sm:$0xf]
    %v185 = vld [vmem:[#allocation10 + $0xc] sm:$0xf]
    %v186 = vld [vmem:[#allocation10 + $0x10] sm:$0xf]
    %v187 = vld [vmem:[#allocation10 + $0x14] sm:$0xf]
    %v188 = vld [vmem:[#allocation10 + $0x18] sm:$0xf]
    %v189 = vld [vmem:[#allocation10 + $0x1c] sm:$0xf]
    %v190 = vld [vmem:[#allocation10 + $0x20] sm:$0xf]
    %v191 = vld [vmem:[#allocation10 + $0x24] sm:$0xf]
    %v192 = vld [vmem:[#allocation10 + $0x28] sm:$0xf]
    %v193 = vld [vmem:[#allocation10 + $0x2c] sm:$0xf]
    %v194 = vld [vmem:[#allocation10 + $0x30] sm:$0xf]
    %v195 = vld [vmem:[#allocation10 + $0x34] sm:$0xf]
    %v196 = vld [vmem:[#allocation10 + $0x38] sm:$0xf]
    %v197 = vld [vmem:[#allocation10 + $0x3c] sm:$0xf]
    %v198 = vld [vmem:[#allocation11] sm:$0x1]
    %v200 = vlaneseq
    %v201 = vshrl.u32 %v200, 7
    %v202 = vsub.s32 0, %v201
    %v203 = vrot.slane %v198, %v202
    %v221 = vunpack.c.l.b16 %v182
    %v222 = vunpack.c.l.b16 %v183
    %v223 = vunpack.c.l.b16 %v184
    %v224 = vunpack.c.l.b16 %v185
    %v225 = vunpack.c.l.b16 %v186
    %v226 = vunpack.c.l.b16 %v187
    %v227 = vunpack.c.l.b16 %v188
    %v228 = vunpack.c.l.b16 %v189
    %v229 = vunpack.c.l.b16 %v190
    %v230 = vunpack.c.l.b16 %v191
    %v231 = vunpack.c.l.b16 %v192
    %v232 = vunpack.c.l.b16 %v193
    %v233 = vunpack.c.l.b16 %v194
    %v234 = vunpack.c.l.b16 %v195
    %v235 = vunpack.c.l.b16 %v196
    %v236 = vunpack.c.l.b16 %v197
    %v237 = vpack.c.b16 %v222, %v221
    %v238 = vpack.c.b16 %v224, %v223
    %v239 = vpack.c.b16 %v226, %v225
    %v240 = vpack.c.b16 %v228, %v227
    %v241 = vpack.c.b16 %v230, %v229
    %v242 = vpack.c.b16 %v232, %v231
    %v243 = vpack.c.b16 %v234, %v233
    %v244 = vpack.c.b16 %v236, %v235
    %vm245 = vcmask 261120
    %v247 = vsel %vm245, %v181, 0
    %v250 = vsel %vm245, %v237, 0
    %v253 = vsel %vm245, %v238, 0
    %v256 = vsel %vm245, %v239, 0
    %v259 = vsel %vm245, %v240, 0
    %v262 = vsel %vm245, %v241, 0
    %v265 = vsel %vm245, %v242, 0
    %v268 = vsel %vm245, %v243, 0
    %v271 = vsel %vm245, %v244, 0
    %273 = vmatprep.subr.bf16.mxu0 0
    %274 = vmatpush1.bf16.xpose.msra.mxu0 %v250
    %275 = vmatprep.subr.bf16.mxu0 0
    %276 = vmatpush1.bf16.xpose.msra.mxu0 %v253
    %277 = vmatprep.subr.bf16.mxu0 0
    %278 = vmatpush1.bf16.xpose.msra.mxu0 %v256
    %279 = vmatprep.subr.bf16.mxu0 0
    %280 = vmatpush1.bf16.xpose.msra.mxu0 %v259
    %281 = vmatprep.subr.bf16.mxu0 0
    %282 = vmatpush1.bf16.xpose.msra.mxu0 %v262
    %283 = vmatprep.subr.bf16.mxu0 0
    %284 = vmatpush1.bf16.xpose.msra.mxu0 %v265
    %285 = vmatprep.subr.bf16.mxu0 0
    %286 = vmatpush1.bf16.xpose.msra.mxu0 %v268
    %287 = vmatprep.subr.bf16.mxu0 0
    %288 = vmatpush1.bf16.xpose.msra.mxu0 %v271
    %289 = vmatprep.subr.bf16.mxu0 0
    %290 = vmatpush1.bf16.xpose.msra.mxu0 0
    %291 = vmatprep.subr.bf16.mxu0 0
    %292 = vmatpush1.bf16.xpose.msra.mxu0 0
    %293 = vmatprep.subr.bf16.mxu0 0
    %294 = vmatpush1.bf16.xpose.msra.mxu0 0
    %295 = vmatprep.subr.bf16.mxu0 0
    %296 = vmatpush1.bf16.xpose.msra.mxu0 0
    %297 = vmatprep.subr.bf16.mxu0 0
    %298 = vmatpush1.bf16.xpose.msra.mxu0 0
    %299 = vmatprep.subr.bf16.mxu0 0
    %300 = vmatpush1.bf16.xpose.msra.mxu0 0
    %301 = vmatprep.subr.bf16.mxu0 0
    %302 = vmatpush1.bf16.xpose.msra.mxu0 0
    %303 = vmatprep.subr.bf16.mxu0 0
    %304 = vmatpush1.bf16.xpose.msra.mxu0 0
    %305 = vmatprep.mubr.bf16.mxu0 0
    %306 = vmatmul.mubr.bf16.gmra.mrb[0].mxu0 %v247
    %v307 = vpop.f32.mrb[0].mxu0
    %v308 = vadd.f32 %v203, %v307
    %v309 = vpop.f32.mrb[0].mxu0
    %v310 = vpop.f32.mrb[0].mxu0
    %v311 = vadd.f32 %v203, %v310
    %v312 = vpop.f32.mrb[0].mxu0
    %313 = vdwg.mxu0
    %v314 = vxor.u32 %v308, 2147483648
    %v315 = vxor.u32 %v311, 2147483648
    %v316 = vmul.f32 %v314, 1.442695
    %v317 = vpow.pop %v316
    %v318 = vmul.f32 %v315, 1.442695
    %v319 = vpow.pop %v318
    %v320 = vadd.f32 %v317, 1.0
    %v321 = vadd.f32 %v319, 1.0
    %v322 = vrcp.pop %v320
    %v323 = vmul.f32 1.0, %v322
    %v324 = vrcp.pop %v321
    %v325 = vmul.f32 1.0, %v324
    %v326 = vmul.f32 %v308, %v323
    %v327 = vmul.f32 %v311, %v325
    %v328 = vpack.c.bf16 %v327, %v326
    %v329 = vld [vmem:[#allocation13] sm:$0xf]
    %v330 = vld [vmem:[#allocation13 + $0x4] sm:$0xf]
    %v331 = vld [vmem:[#allocation13 + $0x8] sm:$0xf]
    %v332 = vld [vmem:[#allocation13 + $0xc] sm:$0xf]
    %v333 = vld [vmem:[#allocation14] sm:$0x1]
    %v335 = vlaneseq
    %v336 = vshrl.u32 %v335, 7
    %v337 = vsub.s32 0, %v336
    %v338 = vrot.slane %v333, %v337
    %v344 = vunpack.c.l.b16 %v329
    %v345 = vunpack.c.l.b16 %v330
    %v346 = vunpack.c.l.b16 %v331
    %v347 = vunpack.c.l.b16 %v332
    %v348 = vpack.c.b16 %v345, %v344
    %v349 = vpack.c.b16 %v347, %v346
    %352 = vmatprep.subr.bf16.mxu0 0
    %353 = vmatpush1.bf16.xpose.msra.mxu0 %v348
    %354 = vmatprep.subr.bf16.mxu0 0
    %355 = vmatpush1.bf16.xpose.msra.mxu0 %v349
    %356 = vmatprep.subr.bf16.mxu0 0
    %357 = vmatpush1.bf16.xpose.msra.mxu0 0
    %358 = vmatprep.subr.bf16.mxu0 0
    %359 = vmatpush1.bf16.xpose.msra.mxu0 0
    %360 = vmatprep.subr.bf16.mxu0 0
    %361 = vmatpush1.bf16.xpose.msra.mxu0 0
    %362 = vmatprep.subr.bf16.mxu0 0
    %363 = vmatpush1.bf16.xpose.msra.mxu0 0
    %364 = vmatprep.subr.bf16.mxu0 0
    %365 = vmatpush1.bf16.xpose.msra.mxu0 0
    %366 = vmatprep.subr.bf16.mxu0 0
    %367 = vmatpush1.bf16.xpose.msra.mxu0 0
    %368 = vmatprep.subr.bf16.mxu0 0
    %369 = vmatpush1.bf16.xpose.msra.mxu0 0
    %370 = vmatprep.subr.bf16.mxu0 0
    %371 = vmatpush1.bf16.xpose.msra.mxu0 0
    %372 = vmatprep.subr.bf16.mxu0 0
    %373 = vmatpush1.bf16.xpose.msra.mxu0 0
    %374 = vmatprep.subr.bf16.mxu0 0
    %375 = vmatpush1.bf16.xpose.msra.mxu0 0
    %376 = vmatprep.subr.bf16.mxu0 0
    %377 = vmatpush1.bf16.xpose.msra.mxu0 0
    %378 = vmatprep.subr.bf16.mxu0 0
    %379 = vmatpush1.bf16.xpose.msra.mxu0 0
    %380 = vmatprep.subr.bf16.mxu0 0
    %381 = vmatpush1.bf16.xpose.msra.mxu0 0
    %382 = vmatprep.subr.bf16.mxu0 0
    %383 = vmatpush1.bf16.xpose.msra.mxu0 0
    %384 = vmatprep.mubr.bf16.mxu0 0
    %385 = vmatmul.mubr.bf16.gmra.mrb[0].mxu0 %v328
    %v386 = vpop.f32.mrb[0].mxu0
    %v387 = vadd.f32 %v338, %v386
    %v388 = vpop.f32.mrb[0].mxu0
    %v389 = vpop.f32.mrb[0].mxu0
    %v390 = vadd.f32 %v338, %v389
    %v391 = vpop.f32.mrb[0].mxu0
    %392 = vdwg.mxu0
    %v393 = vxor.u32 %v387, 2147483648
    %v394 = vxor.u32 %v390, 2147483648
    %v395 = vmul.f32 %v393, 1.442695
    %v396 = vpow.pop %v395
    %v397 = vmul.f32 %v394, 1.442695
    %v398 = vpow.pop %v397
    %v399 = vadd.f32 %v396, 1.0
    %v400 = vadd.f32 %v398, 1.0
    %v401 = vrcp.pop %v399
    %v402 = vmul.f32 1.0, %v401
    %v403 = vrcp.pop %v400
    %v404 = vmul.f32 1.0, %v403
    %v405 = vmul.f32 %v402, %v175
    %v406 = vmul.f32 %v404, %v176
    %v407 = vsub.f32 1.0, %v402
    %v408 = vsub.f32 1.0, %v404
    %v409 = vmul.f32 %v407, %v179
    %v410 = vmul.f32 %v408, %v180
    %v411 = vadd.f32 %v405, %v409
    %v412 = vadd.f32 %v406, %v410
    %413 = vst.msk [vmem:[#allocation16] sm:$0xff] %vm245, %v411
    %414 = vst.msk [vmem:[#allocation16 + $0x8] sm:$0xff] %vm245, %v412
    // Predicated region
    $region66: #{tpu_custom_call.1} parent=1 // pred_check
      _
    $region67: #{tpu_custom_call.1} parent=1 // pred_check_branch
      %416 = sbr.rel (0) target = $region69
    $region68: #{tpu_custom_call.1} parent=1 // pred_region
      %s418 = ssub.s32 256, 256
      %419 = vsyncadd [#allocation4], %s418
      %s420 = sshll.u32 [#allocation16], 4
      %s421 = int_to_ptr.vmem [resolvable:$true] %s420
      %426 = dma.vmem_to_hbm [thread:$0]  %s421, 256, %s8, [#allocation4], 128, 128, 8
    $region69: #{tpu_custom_call.1} parent=1 // pred_fallthru
      _
    // Predicated region
    $region70: #{tpu_custom_call.1} parent=1 // pred_check
      _
    $region71: #{tpu_custom_call.1} parent=1 // pred_check_branch
      %428 = sbr.rel (0) target = $region73
    $region72: #{tpu_custom_call.1} parent=1 // pred_region
      %429 = dma.done [#allocation4], 256
    $region73: #{tpu_custom_call.1} parent=1 // pred_fallthru
      _
    %430 = vsyncpa [#allocation3], 1
    %431 = vsyncpa [#allocation6], 1
    %432 = vsyncpa [#allocation9], 1
    %433 = vsyncpa [#allocation12], 1
    %434 = vsyncpa [#allocation15], 1
    %435 = vsyncpa [#allocation4], 1

</llo_original>
